<compile_context>
chip_gen: v5e
topology: v5e:2x2
jax: 0.10.0
libtpu: 0.0.40
codegen_flags: <defaults>
</compile_context>

<pallas_src>
import functools

import jax
import jax.numpy as jnp
from jax.experimental import pallas as pl
from jax.experimental.pallas import tpu as pltpu

_EPS = 1e-6  # F.pairwise_distance default eps, added elementwise to the difference


def _contrastive_kernel(o1_ref, o2_ref, t_ref, out_ref, *, margin, batch, tile_b):
    # Stream tiles in their native dtype; do the math in f32 on-chip.
    o1 = o1_ref[...].astype(jnp.float32)                      # (TB, D)
    o2 = o2_ref[...].astype(jnp.float32)                      # (TB, D)
    diff = o1 - o2 + _EPS
    sq_sum = jnp.sum(diff * diff, axis=1, keepdims=True)      # (TB, 1) lane reduction == d^2
    d = jnp.sqrt(sq_sum)                                      # euclidean distance (hinge branch only)
    hinge = jnp.maximum(margin - d, 0.0)                      # relu(margin - d)
    t = t_ref[...]                                            # (TB, 1) f32
    per_example = t * sq_sum + (1.0 - t) * (hinge * hinge)    # (TB, 1)

    # Mask padded rows of the last (possibly partial) batch tile.
    row = pl.program_id(0) * tile_b + jax.lax.broadcasted_iota(jnp.int32, (tile_b, 1), 0)
    per_example = jnp.where(row < batch, per_example, 0.0)

    partial = jnp.sum(per_example)                            # scalar partial sum for this tile
    # Lane-dense (1, 8, 128) output block -> unmasked vector stores; wrapper reads [tile, 0, 0].
    out_ref[...] = jnp.full(out_ref.shape, partial, dtype=jnp.float32)


def _pick_batch_tile(batch, dim, itemsize):
    """Largest batch tile s.t. 2 inputs x 2 pipeline buffers stay well under VMEM limits."""
    budget_bytes = 12 * 1024 * 1024  # safe for v7x (32 MiB scoped default, 64 MiB physical)
    tb = budget_bytes // max(1, 4 * dim * itemsize)
    tb = max(8, (tb // 8) * 8)       # multiple of 8 sublanes
    return batch if tb >= batch else tb
    # TODO(synk): for extremely large D where even TB=8 blows the budget, the feature axis
    # would also need tiling with a cross-tile accumulator; not needed at these shapes.


def contrastive_loss(outputs1, outputs2, targets, margin=1.0):
    """outputs1, outputs2: (B, D) float/bfloat arrays; targets: (B,) in {0, 1}."""
    B, D = outputs1.shape
    assert outputs2.shape == (B, D)
    # Targets are tiny; a (B, 1) f32 column pairs directly with the (TB, 1) lane-reduction
    # result (no in-kernel transpose) and its DMA is negligible vs. the (TB, D) feature tiles.
    t = targets.reshape(B, 1).astype(jnp.float32)

    itemsize = jnp.dtype(outputs1.dtype).itemsize
    tile_b = _pick_batch_tile(B, D, itemsize)
    num_tiles = (B + tile_b - 1) // tile_b

    kernel = functools.partial(
        _contrastive_kernel, margin=float(margin), batch=B, tile_b=tile_b
    )

    partials = pl.pallas_call(
        kernel,
        out_shape=jax.ShapeDtypeStruct((num_tiles, 8, 128), jnp.float32),
        grid=(num_tiles,),
        in_specs=[
            pl.BlockSpec((tile_b, D), lambda i: (i, 0)),  # outputs1 tile (native dtype)
            pl.BlockSpec((tile_b, D), lambda i: (i, 0)),  # outputs2 tile (native dtype)
            pl.BlockSpec((tile_b, 1), lambda i: (i, 0)),  # targets tile
        ],
        out_specs=pl.BlockSpec((1, 8, 128), lambda i: (i, 0, 0)),
        compiler_params=pltpu.CompilerParams(
            # Tiles are fully independent -> allow megacore sharding on v7x.
            dimension_semantics=("parallel",),
        ),
        cost_estimate=pl.CostEstimate(
            flops=3 * B * D,
            transcendentals=B,
            bytes_accessed=2 * B * D * itemsize + B * 4 + num_tiles * 8 * 128 * 4,
        ),
    )(outputs1, outputs2, t)

    # Final (tiny) reduction + mean in the wrapper; exact 1/B regardless of tile padding.
    return jnp.sum(partials[:, 0, 0]) * (1.0 / B)


def _reference_loss(outputs1, outputs2, targets, margin=1.0):
    diff = outputs1.astype(jnp.float32) - outputs2.astype(jnp.float32) + _EPS
    d = jnp.sqrt(jnp.sum(diff * diff, axis=1))
    loss = targets * d**2 + (1.0 - targets) * jnp.maximum(margin - d, 0.0) ** 2
    return jnp.mean(loss)


if __name__ == "__main__":
    key = jax.random.PRNGKey(0)
    k1, k2, k3 = jax.random.split(key, 3)

    B, D = 8, 32
    outputs1 = jax.random.normal(k1, (B, D), dtype=jnp.float32)
    outputs2 = jax.random.normal(k2, (B, D), dtype=jnp.float32)
    targets = jax.random.bernoulli(k3, 0.5, (B,)).astype(jnp.float32)

    loss = contrastive_loss(outputs1, outputs2, targets, margin=1.0)
    loss = jax.block_until_ready(loss)

    ref = _reference_loss(outputs1, outputs2, targets, margin=1.0)
    assert jnp.allclose(loss, ref, rtol=1e-5, atol=1e-5), (loss, ref)

    print("KERNEL_OK")
</pallas_src>

<mosaic_0001>
module attributes {stable_mosaic.version = 11 : i64} {
  func.func @_contrastive_kernel(%arg0: i32, %arg1: memref<8x32xf32, #tpu.memory_space<vmem>>, %arg2: memref<8x32xf32, #tpu.memory_space<vmem>>, %arg3: memref<8x1xf32, #tpu.memory_space<vmem>>, %arg4: memref<1x8x128xf32, #tpu.memory_space<vmem>>) attributes {dimension_semantics = [#tpu.dimension_semantics<parallel>], iteration_bounds = array<i64: 1>, scalar_prefetch = 0 : i64, scratch_operands = 0 : i64, tpu.core_type = #tpu.core_type<tc>, window_params = [{transform_indices = @transform_0, window_bounds = array<i64: 8, 32>}, {transform_indices = @transform_1, window_bounds = array<i64: 8, 32>}, {transform_indices = @transform_2, window_bounds = array<i64: 8, 1>}, {transform_indices = @transform_3, window_bounds = array<i64: 1, 8, 128>}]} {
    %c0 = arith.constant 0 : index
    %c0_0 = arith.constant 0 : index
    %0 = vector.load %arg1[%c0, %c0_0] : memref<8x32xf32, #tpu.memory_space<vmem>>, vector<8x32xf32>
    %c0_1 = arith.constant 0 : index
    %c0_2 = arith.constant 0 : index
    %1 = vector.load %arg2[%c0_1, %c0_2] : memref<8x32xf32, #tpu.memory_space<vmem>>, vector<8x32xf32>
    %2 = arith.subf %0, %1 : vector<8x32xf32>
    %cst = arith.constant 9.99999997E-7 : f32
    %3 = vector.broadcast %cst : f32 to vector<8x32xf32>
    %4 = arith.addf %2, %3 : vector<8x32xf32>
    %5 = arith.mulf %4, %4 : vector<8x32xf32>
    %cst_3 = arith.constant dense<0.000000e+00> : vector<8xf32>
    %6 = vector.multi_reduction <add>, %5, %cst_3 [1] : vector<8x32xf32> to vector<8xf32>
    %7 = vector.shape_cast %6 : vector<8xf32> to vector<8x1xf32>
    %8 = math.sqrt %7 : vector<8x1xf32>
    %cst_4 = arith.constant 1.000000e+00 : f32
    %9 = vector.broadcast %cst_4 : f32 to vector<8x1xf32>
    %10 = arith.subf %9, %8 : vector<8x1xf32>
    %cst_5 = arith.constant 0.000000e+00 : f32
    %11 = vector.broadcast %cst_5 : f32 to vector<8x1xf32>
    %12 = arith.maximumf %10, %11 : vector<8x1xf32>
    %c0_6 = arith.constant 0 : index
    %c0_7 = arith.constant 0 : index
    %13 = vector.load %arg3[%c0_6, %c0_7] : memref<8x1xf32, #tpu.memory_space<vmem>>, vector<8x1xf32>
    %14 = arith.mulf %13, %7 : vector<8x1xf32>
    %cst_8 = arith.constant 1.000000e+00 : f32
    %15 = vector.broadcast %cst_8 : f32 to vector<8x1xf32>
    %16 = arith.subf %15, %13 : vector<8x1xf32>
    %17 = arith.mulf %12, %12 : vector<8x1xf32>
    %18 = arith.mulf %16, %17 : vector<8x1xf32>
    %19 = arith.addf %14, %18 : vector<8x1xf32>
    %c8_i32 = arith.constant 8 : i32
    %20 = arith.muli %arg0, %c8_i32 : i32
    %21 = tpu.iota {dimensions = array<i32: 0>} : vector<8x1xi32>
    %22 = vector.broadcast %20 : i32 to vector<8x1xi32>
    %23 = arith.addi %22, %21 : vector<8x1xi32>
    %c8_i32_9 = arith.constant 8 : i32
    %24 = vector.broadcast %c8_i32_9 : i32 to vector<8x1xi32>
    %25 = arith.cmpi slt, %23, %24 : vector<8x1xi32>
    %cst_10 = arith.constant 0.000000e+00 : f32
    %26 = vector.broadcast %cst_10 : f32 to vector<8x1xf32>
    %27 = arith.select %25, %19, %26 : vector<8x1xi1>, vector<8x1xf32>
    %28 = vector.shape_cast %27 : vector<8x1xf32> to vector<1x8x1xf32>
    %cst_11 = arith.constant dense<0.000000e+00> : vector<1xf32>
    %29 = vector.multi_reduction <add>, %28, %cst_11 [1, 2] : vector<1x8x1xf32> to vector<1xf32>
    %30 = vector.shape_cast %29 : vector<1xf32> to vector<1x1x1xf32>
    %31 = vector.extract %30[0, 0, 0] : f32 from vector<1x1x1xf32>
    %32 = vector.broadcast %31 : f32 to vector<1x8x128xf32>
    %c0_12 = arith.constant 0 : index
    %c0_13 = arith.constant 0 : index
    %c0_14 = arith.constant 0 : index
    %33 = vector.load %arg4[%c0_12, %c0_13, %c0_14] : memref<1x8x128xf32, #tpu.memory_space<vmem>>, vector<1x8x128xf32>
    tpu.vector_store %arg4[%c0_12, %c0_13, %c0_14], %32 {strides = array<i32>} : memref<1x8x128xf32, #tpu.memory_space<vmem>>, vector<1x8x128xf32>,
    return
  }
  func.func @transform_0(%arg0: i32) -> (i32, i32) {
    %c0_i32 = arith.constant 0 : i32
    %c0_i32_0 = arith.constant 0 : i32
    return %arg0, %c0_i32 : i32, i32
  }
  func.func @transform_1(%arg0: i32) -> (i32, i32) {
    %c0_i32 = arith.constant 0 : i32
    %c0_i32_0 = arith.constant 0 : i32
    return %arg0, %c0_i32 : i32, i32
  }
  func.func @transform_2(%arg0: i32) -> (i32, i32) {
    %c0_i32 = arith.constant 0 : i32
    %c0_i32_0 = arith.constant 0 : i32
    return %arg0, %c0_i32 : i32, i32
  }
  func.func @transform_3(%arg0: i32) -> (i32, i32, i32) {
    %c0_i32 = arith.constant 0 : i32
    %c0_i32_0 = arith.constant 0 : i32
    %c0_i32_1 = arith.constant 0 : i32
    return %arg0, %c0_i32, %c0_i32_0 : i32, i32, i32
  }
}

</mosaic_0001>

<llo_original>
// kernel: tpu_custom_call.1
$region0: #{tpu_custom_call.1}
  #allocation0 [shape = 'u32[]', space=smem, size = 0x4, offset = 0x4, fixed_abs, tag = 'smem constant byte address 0x4 - core index']
  #allocation1 [shape = 'u32[72,128]{1,0:T(1,128)}', space=vmem, size = 0x9000, scoped, tag = 'internal scratch']
  %s0 = inlined_call_operand.vmem [shape: f32[8,32], index: 0, kind: input, shape index: {}]
  %s1 = inlined_call_operand.hbm [shape: f32[8,32], index: 1, kind: input, shape index: {}]
  %s2 = inlined_call_operand.vmem [shape: f32[8,1], index: 2, kind: input, shape index: {}]
  %s3 = inlined_call_operand.hbm [shape: f32[1,8,128], index: 3, kind: output, shape index: {}]
  %s4 = sld [smem:[#allocation0]]
  $region26: #{tpu_custom_call.1} parent=0
    _
  %s6 = ssub.s32 1, %s4
  %s7 = scalar_select 0, %s6, %s4
  $region1: #{tpu_custom_call.1} parent=0
    #allocation2 [shape = 'u8[4096]{0}', space=vmem, size = 0x1000, scoped, tag = 'input window, operand 1, single buffered']
    #allocation3 [shape = 's32[1]{0}', space=sflag, size = 0x4, scoped, tag = 'scoped memory for tpu_custom_call.1']
    #allocation4 [shape = 's32[1]{0}', space=sflag, size = 0x4, scoped, tag = 'scoped memory for tpu_custom_call.1']
    #allocation5 [shape = 'u8[4096]{0}', space=vmem, size = 0x1000, scoped, tag = 'output window, operand 0, single buffered']
    %8 = vsyncpa [#allocation3], 0
    %9 = vsyncpa [#allocation4], 0
    // Predicated region
    $region2: #{tpu_custom_call.1} parent=1 // pred_check
      _
    $region3: #{tpu_custom_call.1} parent=1 // pred_check_branch
      %11 = sbr.rel (0) target = $region5
    $region4: #{tpu_custom_call.1} parent=1 // pred_region
      _
    $region5: #{tpu_custom_call.1} parent=1 // pred_fallthru
      _
    // Predicated region
    $region6: #{tpu_custom_call.1} parent=1 // pred_check
      _
    $region7: #{tpu_custom_call.1} parent=1 // pred_check_branch
      %13 = sbr.rel (0) target = $region9
    $region8: #{tpu_custom_call.1} parent=1 // pred_region
      %15 = vsyncadd [#allocation3], 0
      %s17 = sshll.u32 %s1, 4
      %s18 = int_to_ptr.hbm [resolvable:$true] %s17
      %s19 = sshll.u32 [#allocation2], 4
      %s20 = int_to_ptr.vmem [resolvable:$true] %s19
      %22 = dma.hbm_to_vmem [thread:$0]  %s18, 128, %s20, [#allocation3]
    $region9: #{tpu_custom_call.1} parent=1 // pred_fallthru
      _
    // Predicated region
    $region10: #{tpu_custom_call.1} parent=1 // pred_check
      _
    $region11: #{tpu_custom_call.1} parent=1 // pred_check_branch
      %24 = sbr.rel (0) target = $region13
    $region12: #{tpu_custom_call.1} parent=1 // pred_region
      _
    $region13: #{tpu_custom_call.1} parent=1 // pred_fallthru
      _
    // Predicated region
    $region14: #{tpu_custom_call.1} parent=1 // pred_check
      _
    $region15: #{tpu_custom_call.1} parent=1 // pred_check_branch
      %26 = sbr.rel (0) target = $region17
    $region16: #{tpu_custom_call.1} parent=1 // pred_region
      %28 = dma.done [#allocation3], 128
    $region17: #{tpu_custom_call.1} parent=1 // pred_fallthru
      _
    %v29 = vld [vmem:[%s0] sm:$0xff]
    %v30 = vld [vmem:[#allocation2] sm:$0xff]
    %v31 = vsub.f32 %v29, %v30
    %v32 = vadd.f32 %v31, 1e-06
    %v33 = vmul.f32 %v32, %v32
    %vm34 = vcmask 261120
    %v35 = vsel %vm34, %v33, 0.0
    %36 = vadd.xlane.f32.xlu0 %v35
    %v37 = vpop.xlane.xlu0 %36
    %v38 = vrsqrt.pop %v37
    %v39 = vmul.f32 %v38, %v37
    %v40 = vmul.f32 %v39, %v38
    %v41 = vmul.f32 0.5, %v40
    %v42 = vsub.f32 1.5, %v41
    %v43 = vmul.f32 %v38, %v42
    %v44 = vmul.f32 %v37, %v43
    %vm45 = vcmp.eq.f32.partialorder %v37, inf
    %v46 = vsel %vm45, %v37, %v44
    %vm47 = vcmp.eq.f32.partialorder %v37, 0.0
    %v48 = vand.u32 %v37, 2147483648
    %v49 = vsel %vm47, %v48, %v46
    %v50 = vsub.f32 1.0, %v49
    %v51 = vmax.f32 %v50, 0.0
    %v52 = vld [vmem:[%s2] sm:$0xff]
    %v53 = vmul.f32 %v52, %v37
    %v54 = vsub.f32 1.0, %v52
    %v55 = vmul.f32 %v51, %v51
    %v56 = vmul.f32 %v54, %v55
    %v57 = vadd.f32 %v53, %v56
    %s58 = smul.u32 0, 8
    %v59 = vlaneseq
    %v60 = vshrl.u32 %v59, 7
    %v61 = vstv %s58
    %v62 = vadd.s32 %v61, %v60
    %vm63 = vcmp.lt.s32.totalorder %v62, 8
    %v64 = vsel %vm63, %v57, 0.0
    %vm65 = vcmask 7168
    %v66 = vsel %vm65, %v64, 0.0
    %67 = vadd.xlane.f32.xlu0 %v66
    %v68 = vpop.xlane.xlu0 %67
    %v69 = vrot.slane %v68, 4
    %v70 = vadd.f32 %v68, %v69
    %v71 = vrot.slane %v70, 2
    %v72 = vadd.f32 %v70, %v71
    %v73 = vrot.slane %v72, 1
    %v74 = vadd.f32 %v72, %v73
    %s75 = vtos %v74
    %v76 = vstv %s75
    %77 = vst [vmem:[#allocation5] sm:$0xff] %v76
    // Predicated region
    $region18: #{tpu_custom_call.1} parent=1 // pred_check
      _
    $region19: #{tpu_custom_call.1} parent=1 // pred_check_branch
      %79 = sbr.rel (0) target = $region21
    $region20: #{tpu_custom_call.1} parent=1 // pred_region
      %81 = vsyncadd [#allocation4], 0
      %s83 = sshll.u32 [#allocation5], 4
      %s84 = int_to_ptr.vmem [resolvable:$true] %s83
      %s85 = sshll.u32 %s3, 4
      %s86 = int_to_ptr.hbm [resolvable:$true] %s85
      %88 = dma.vmem_to_hbm [thread:$0]  %s84, 128, %s86, [#allocation4]
    $region21: #{tpu_custom_call.1} parent=1 // pred_fallthru
      _
    // Predicated region
    $region22: #{tpu_custom_call.1} parent=1 // pred_check
      _
    $region23: #{tpu_custom_call.1} parent=1 // pred_check_branch
      %90 = sbr.rel (0) target = $region25
    $region24: #{tpu_custom_call.1} parent=1 // pred_region
      %92 = dma.done [#allocation4], 128
    $region25: #{tpu_custom_call.1} parent=1 // pred_fallthru
      _
    %93 = vsyncpa [#allocation3], 1
    %94 = vsyncpa [#allocation4], 1

</llo_original>
